<compile_context>
chip_gen: v7x
topology: tpu7x:2x2x1
jax: 0.10.0
libtpu: 0.0.40
codegen_flags: <defaults>
</compile_context>

<pallas_src>
import math
from functools import partial
from typing import Dict, List, Tuple

import numpy as np
import jax
import jax.numpy as jnp
from jax.experimental import pallas as pl
from jax.experimental.pallas import tpu as pltpu


def _pad_to(n: int, m: int) -> int:
    return ((n + m - 1) // m) * m


# ----------------------------------------------------------------------------
# Pallas kernel 1: multiscale weighted fusion of gathered scale embeddings.
#   stacked: (S, N, D)  weights: (S,)  ->  out: (N, D) = sum_s w[s] * stacked[s]
# Row-tiled grid (review item: the old grid=(1,) whole-array block had no
# pipelining and blew scoped VMEM at long-form sizes).
# ----------------------------------------------------------------------------
def _fuse_kernel(w_ref, emb_ref, out_ref):
    S = emb_ref.shape[0]
    acc = w_ref[0] * emb_ref[0]
    for s in range(1, S):
        acc = acc + w_ref[s] * emb_ref[s]
    out_ref[...] = acc


@partial(jax.jit, static_argnames=("rows_out",))
def _fuse_scales_call(stacked, weights, rows_out):
    """stacked: (S, N, D) -> (Np, Dp) fused, zero-padded to Np>=rows_out rows."""
    S, N, D = stacked.shape
    Np = _pad_to(max(int(rows_out), _pad_to(N, 128)), 128)
    Dp = _pad_to(D, 128)
    rb = 128
    for cand in (512, 256, 128):
        if Np % cand == 0:
            rb = cand
            break
    stk = jnp.zeros((S, Np, Dp), jnp.float32).at[:, :N, :D].set(
        stacked.astype(jnp.float32))
    out = pl.pallas_call(
        _fuse_kernel,
        out_shape=jax.ShapeDtypeStruct((Np, Dp), jnp.float32),
        grid=(Np // rb,),
        in_specs=[
            pl.BlockSpec(memory_space=pltpu.MemorySpace.SMEM),     # weights (S,)
            pl.BlockSpec((S, rb, Dp), lambda i: (0, i, 0)),        # row tile, all scales
        ],
        out_specs=pl.BlockSpec((rb, Dp), lambda i: (i, 0)),
        compiler_params=pltpu.CompilerParams(
            dimension_semantics=("parallel",),
            vmem_limit_bytes=32 * 1024 * 1024),
    )(weights.astype(jnp.float32), stk)
    return out


# ----------------------------------------------------------------------------
# Pallas kernel 2a: one-pass row normalization + dtype cast (hoisted pre-pass).
# Pallas kernel 2b: cosine affinity matmul + fused per-tile min/max partials.
# ----------------------------------------------------------------------------
def _rownorm_kernel(x_ref, o_ref):
    x = x_ref[0]
    inv = jax.lax.rsqrt(jnp.sum(x * x, axis=-1, keepdims=True) + 1e-12)
    o_ref[0] = (x * inv).astype(o_ref.dtype)


def _affinity_kernel(x_ref, y_ref, sim_ref, mn_ref, mx_ref, *, n_valid, rb, cb):
    # bf16 / f32 inputs, f32 accumulation on the MXU.
    # TODO(synk): x @ y.T form (contraction on both last dims, flash-attn style);
    # a pre-transposed y layout could remove any per-tile vxpose if Mosaic emits one.
    s = jax.lax.dot_general(
        x_ref[0], y_ref[0], (((1,), (1,)), ((), ())),
        preferred_element_type=jnp.float32)
    sim_ref[0] = s
    # Fused per-tile min/max partials (saves a full N^2 re-read in HBM).
    # Padded rows/cols of the normalized operands are exactly zero, so padded
    # entries of `s` are exactly 0.0: they can never exceed the diagonal (~1.0),
    # so only the *min* needs masking against the padded region.
    i = pl.program_id(1)
    j = pl.program_id(2)
    rows = i * rb + jax.lax.broadcasted_iota(jnp.int32, (rb, 1), 0)
    cols = j * cb + jax.lax.broadcasted_iota(jnp.int32, (1, cb), 1)
    valid = (rows < n_valid) & (cols < n_valid)
    tile_min = jnp.min(jnp.where(valid, s, jnp.inf))
    tile_max = jnp.max(s)
    mn_ref[0] = jnp.zeros((8, 128), jnp.float32) + tile_min
    mx_ref[0] = jnp.zeros((8, 128), jnp.float32) + tile_max


def _affinity_tiles(N: int) -> Tuple[int, int, int, int, int]:
    """Pick (Nr, rb, Nc, cb, NROWS).

    - Columns padded to 128 (small N) or 256 (large N) only; cb is a divisor of Nc
      so no junk column blocks.  For N <= 2048 the y operand is column-stationary
      (cb == Nc -> DMA'd once per batch element).
    - Row tiles 256/512 when N is large (v6e/v7x 256-wide MXU); for small N at
      least 2 row blocks so the 'parallel' row axis can use both v7x TensorCores.
    - NROWS (multiple of 128) is the row extent of the normalized operand array.
    """
    if N <= 2048:
        Nc = _pad_to(max(N, 1), 128)
        cb = Nc
    else:
        Nc = _pad_to(N, 256)
        cb = 256
        for cand in (1024, 512):
            if Nc % cand == 0:
                cb = cand
                break
    if N <= 32:
        rb = _pad_to(max(N, 1), 16)
        Nr = rb
    elif N <= 512:
        rb = _pad_to((N + 1) // 2, 16)   # two row blocks
        Nr = 2 * rb
    else:
        Nr = _pad_to(N, 256)
        rb = 512 if Nr % 512 == 0 else 256
    NROWS = _pad_to(max(Nr, Nc), 128)
    return Nr, rb, Nc, cb, NROWS


def _row_tile(nrows: int) -> int:
    """Largest 128-multiple tile that keeps >=2 blocks (HBM-bound rownorm pass)."""
    for cand in (1024, 512, 256, 128):
        if nrows % cand == 0 and nrows // cand >= 2:
            return cand
    return min(nrows, 128)


@partial(jax.jit, static_argnames=("n_valid", "high_precision"))
def _affinity_impl(emb_b, n_valid, high_precision):
    """emb_b: (B, rows, cols) f32 (possibly pre-padded) -> (B, N, N) min-max scaled
    cosine affinity, N = n_valid."""
    B, Nin, Din = emb_b.shape
    N = int(n_valid)
    Dp = _pad_to(Din, 128)
    Nr, rb, Nc, cb, NROWS = _affinity_tiles(N)

    if (Nin, Din) != (NROWS, Dp):
        rows_copy = min(Nin, NROWS)
        emb_p = jnp.zeros((B, NROWS, Dp), jnp.float32).at[:, :rows_copy, :Din].set(
            emb_b[:, :rows_copy, :].astype(jnp.float32))
    else:
        emb_p = emb_b.astype(jnp.float32)

    norm_dtype = jnp.float32 if high_precision else jnp.bfloat16

    # Normalize every row exactly once (O(N*D)); 512-row tiles (HBM-bound).
    nb = _row_tile(NROWS)
    norm = pl.pallas_call(
        _rownorm_kernel,
        out_shape=jax.ShapeDtypeStruct((B, NROWS, Dp), norm_dtype),
        grid=(B, NROWS // nb),
        in_specs=[pl.BlockSpec((1, nb, Dp), lambda b, i: (b, i, 0))],
        out_specs=pl.BlockSpec((1, nb, Dp), lambda b, i: (b, i, 0)),
        compiler_params=pltpu.CompilerParams(
            dimension_semantics=("parallel", "parallel")),
    )(emb_p)

    # Tiled matmul with fused per-tile min/max partial outputs.
    # TODO(synk): the matrix is symmetric; upper-triangular-only compute + mirror
    # would halve MXU work but is skipped to keep the kernel simple.
    nR, nC = Nr // rb, Nc // cb
    kern = partial(_affinity_kernel, n_valid=N, rb=rb, cb=cb)
    sim, mnb, mxb = pl.pallas_call(
        kern,
        out_shape=(
            jax.ShapeDtypeStruct((B, Nr, Nc), jnp.float32),
            jax.ShapeDtypeStruct((B, nR * 8, nC * 128), jnp.float32),
            jax.ShapeDtypeStruct((B, nR * 8, nC * 128), jnp.float32),
        ),
        grid=(B, nR, nC),
        in_specs=[
            pl.BlockSpec((1, rb, Dp), lambda b, i, j: (b, i, 0)),
            pl.BlockSpec((1, cb, Dp), lambda b, i, j: (b, j, 0)),
        ],
        out_specs=(
            pl.BlockSpec((1, rb, cb), lambda b, i, j: (b, i, j)),
            pl.BlockSpec((1, 8, 128), lambda b, i, j: (b, i, j)),
            pl.BlockSpec((1, 8, 128), lambda b, i, j: (b, i, j)),
        ),
        compiler_params=pltpu.CompilerParams(
            dimension_semantics=("parallel", "parallel", "parallel"),
            vmem_limit_bytes=48 * 1024 * 1024),
    )(norm, norm)

    sim = sim[:, :N, :N]
    mn = jnp.min(mnb, axis=(1, 2), keepdims=True)
    mx = jnp.max(mxb, axis=(1, 2), keepdims=True)
    return (sim - mn) / jnp.maximum(mx - mn, 1e-12)


def cos_affinity_matrix(emb, n_valid=None, high_precision=True):
    """NeMo getCosAffinityMatrix: cosine similarity + global min-max scaling."""
    emb = jnp.asarray(emb, jnp.float32)
    n = int(emb.shape[0]) if n_valid is None else int(n_valid)
    return _affinity_impl(emb[None], n_valid=n, high_precision=bool(high_precision))[0]


# ----------------------------------------------------------------------------
# Clustering helpers (glue around the Pallas kernels).
# ----------------------------------------------------------------------------
def _kmeans_jax(X, k, iters=15):
    # Plain XLA: contraction dim is k<=max_num_speakers, the MXU is idle anyway;
    # keeping this out of Pallas removes per-iteration launch + DMA overhead.
    X = jnp.asarray(X, jnp.float32)
    N = X.shape[0]
    if k <= 1:
        return jnp.zeros((N,), jnp.int32)
    init_idx = jnp.round(jnp.linspace(0, N - 1, k)).astype(jnp.int32)
    C = X[init_idx]
    labels = jnp.zeros((N,), jnp.int32)
    for _ in range(iters):
        d2 = jnp.sum(jnp.square(X[:, None, :] - C[None, :, :]), axis=-1)
        labels = jnp.argmin(d2, axis=1).astype(jnp.int32)
        onehot = jax.nn.one_hot(labels, k, dtype=jnp.float32)
        counts = onehot.sum(axis=0)[:, None]
        sums = onehot.T @ X
        C = jnp.where(counts > 0, sums / jnp.maximum(counts, 1.0), C)
    return labels


def _nmesc_p(N: int, max_rp_threshold: float) -> int:
    p = int(max(2, min(N - 1, round(N * max_rp_threshold)))) + 1  # +1 for self-sim
    return min(p, N)


def _spectral_kmeans_fixed_k(mat, k, p, iters=15):
    """p-neighbor graph -> unnormalized Laplacian -> eigh -> k-means (fixed k)."""
    N = mat.shape[0]
    thresh = jnp.sort(mat, axis=1)[:, N - p][:, None]
    A = jnp.where(mat >= thresh, mat, 0.0)
    A = 0.5 * (A + A.T)
    A = A * (1.0 - jnp.eye(N, dtype=A.dtype))
    L = jnp.diag(jnp.sum(A, axis=1)) - A
    _, evecs = jnp.linalg.eigh(L)
    return _kmeans_jax(evecs[:, :k], k, iters)


@partial(jax.jit, static_argnames=("k", "p", "iters"))
def _batched_spectral_kmeans(mats, k, p, iters=15):
    """All chunk windows share a static shape and a fixed over-cluster count, so the
    whole per-window pipeline is vmapped into a single device launch."""
    return jax.vmap(lambda m: _spectral_kmeans_fixed_k(m, k, p, iters))(mats)


def forward_unit_infer(mat, oracle_num_speakers, max_num_speakers,
                       max_rp_threshold=0.15, sparse_search_volume=30,
                       fixed_thres=-1.0):
    """Simplified NMESC + spectral clustering unit (single matrix)."""
    # TODO(synk): NME sparse p-value search / fixed_thres binarization simplified to
    # a fixed p-neighbor graph; eigendecomposition has no Pallas equivalent (XLA eigh).
    mat = jnp.asarray(mat, jnp.float32)
    N = int(mat.shape[0])
    if N <= 1:
        return jnp.zeros((N,), jnp.int32)
    p = _nmesc_p(N, max_rp_threshold)
    thresh = jnp.sort(mat, axis=1)[:, N - p][:, None]
    A = jnp.where(mat >= thresh, mat, 0.0)
    A = 0.5 * (A + A.T)
    A = A * (1.0 - jnp.eye(N, dtype=A.dtype))
    L = jnp.diag(jnp.sum(A, axis=1)) - A
    evals, evecs = jnp.linalg.eigh(L)
    if oracle_num_speakers > 0:
        k = int(min(oracle_num_speakers, N))
    else:
        m = int(min(max_num_speakers + 1, N))
        gaps = jnp.diff(evals[:m])
        k = int(jnp.argmax(gaps)) + 1
        k = int(max(1, min(k, max_num_speakers, N)))
    return _kmeans_jax(evecs[:, :k], k)


def split_input_data(embeddings_in_scales, timestamps_in_scales, segment_counts):
    emb_list, ts_list = [], []
    off = 0
    for c in segment_counts:
        emb_list.append(embeddings_in_scales[off:off + c])
        ts_list.append(timestamps_in_scales[off:off + c])
        off += c
    return emb_list, ts_list


def get_scale_interpolated_embs(multiscale_weights, embs_in_scales, ts_in_scales,
                                rows_out=128):
    """Map every scale to the base (finest) scale by nearest segment center, then
    fuse across scales with the Pallas weighted-sum kernel.  Returns the fused
    embeddings zero-padded to (>=rows_out, pad(D,128)) so downstream Pallas passes
    can consume them with no extra pad/slice copies."""
    base_centers = jnp.mean(ts_in_scales[-1], axis=1)
    rep_list = []
    for emb_s, ts_s in zip(embs_in_scales, ts_in_scales):
        centers_s = jnp.mean(ts_s, axis=1)
        mapping = jnp.argmin(jnp.abs(base_centers[:, None] - centers_s[None, :]), axis=1)
        rep_list.append(jnp.take(emb_s, mapping, axis=0))
    stacked = jnp.stack(rep_list, axis=0)                 # (S, N_base, D)
    return _fuse_scales_call(stacked, jnp.asarray(multiscale_weights, jnp.float32),
                             rows_out=int(rows_out))


def get_merge_quantity(num_to_be_removed, pre_clus_labels, min_count_per_cluster):
    uniq, counts = np.unique(np.asarray(pre_clus_labels), return_counts=True)
    removed = np.zeros_like(counts)
    for _ in range(int(num_to_be_removed)):
        remaining = counts - removed
        cand = np.where(remaining > min_count_per_cluster)[0]
        if cand.size == 0:
            cand = np.where(remaining > 1)[0]
        if cand.size == 0:
            break
        j = cand[np.argmax(remaining[cand])]
        removed[j] += 1
    return uniq, removed


def run_reducer(pre_embs, target_label, merge_quantity, pre_clus_labels):
    """Merge `merge_quantity`+1 closest-to-centroid embeddings of a cluster into their mean."""
    pre_embs = np.asarray(pre_embs, dtype=np.float32)
    labels = np.asarray(pre_clus_labels)
    idx = np.where(labels == target_label)[0]
    if merge_quantity <= 0:
        return pre_embs[idx], (idx.astype(np.int64), np.zeros((0,), dtype=np.int64))
    cluster = pre_embs[idx]
    centroid = cluster.mean(axis=0)
    cn = cluster / (np.linalg.norm(cluster, axis=1, keepdims=True) + 1e-12)
    mn = centroid / (np.linalg.norm(centroid) + 1e-12)
    sims = cn @ mn
    order = np.argsort(-sims)
    sel = np.sort(idx[order[: merge_quantity + 1]])
    bypassed = np.sort(np.setdiff1d(idx, sel))
    merged = pre_embs[sel].mean(axis=0, keepdims=True)
    merged_embs = np.concatenate([pre_embs[bypassed], merged], axis=0)
    return merged_embs.astype(np.float32), (bypassed.astype(np.int64), sel.astype(np.int64))


# ----------------------------------------------------------------------------
# The module.
# ----------------------------------------------------------------------------
class LongFormSpeakerClustering:
    def __init__(self, chunk_cluster_count: int = 6, embeddings_per_chunk: int = 16):
        # NOTE: NeMo defaults are 50 / 10000; shrunk here so the long-form path
        # triggers at small synthetic shapes. No learnable parameters exist.
        self.chunk_cluster_count = chunk_cluster_count
        self.embeddings_per_chunk = embeddings_per_chunk
        self.embeddings_in_scales: List = []
        self.timestamps_in_scales: List = []

    def check_input(self, embeddings_per_chunk, chunk_cluster_count, max_num_speakers):
        if chunk_cluster_count is None or embeddings_per_chunk is None:
            raise ValueError("chunk_cluster_count and embeddings_per_chunk should be set.")
        if chunk_cluster_count >= embeddings_per_chunk:
            raise ValueError("chunk_cluster_count should be smaller than embeddings_per_chunk.")
        if chunk_cluster_count <= max_num_speakers:
            raise ValueError("chunk_cluster_count should be larger than max_num_speakers.")

    def get_div_ceil_count(self, numer: int, denomin: int) -> int:
        return int(math.ceil(numer / denomin))

    def split_embs_to_windows(self, index, emb, embeddings_per_chunk) -> Tuple[np.ndarray, int]:
        if embeddings_per_chunk * (index + 1) > emb.shape[0]:
            emb_part = emb[-embeddings_per_chunk:]
            offset_index = emb.shape[0] - embeddings_per_chunk
        else:
            emb_part = emb[embeddings_per_chunk * index:embeddings_per_chunk * (index + 1)]
            offset_index = embeddings_per_chunk * index
        return emb_part, offset_index

    def unpack_labels(self, Y_aggr, window_range_list, absolute_merge_mapping, org_len):
        Y_unpack = np.zeros((org_len,), dtype=np.int32)
        for win_rng, abs_mapping in zip(window_range_list, absolute_merge_mapping):
            inferred = Y_aggr[win_rng[0]:win_rng[1]]
            bypassed, merged = abs_mapping
            if len(merged) > 0:
                Y_unpack[merged] = inferred[-1]
                if len(bypassed) > 0:
                    Y_unpack[bypassed] = inferred[:-1]
            elif len(bypassed) > 0:
                Y_unpack[bypassed] = inferred
        return Y_unpack

    # ----- forward wrapper (param_dict interface, like the Triton-jit wrapper) -----
    def forward(self, param_dict: Dict[str, jnp.ndarray]) -> jnp.ndarray:
        return self.forward_infer(
            embeddings_in_scales=param_dict['embeddings'],
            timestamps_in_scales=param_dict['timestamps'],
            multiscale_segment_counts=param_dict['multiscale_segment_counts'],
            multiscale_weights=param_dict['multiscale_weights'],
            oracle_num_speakers=int(param_dict['oracle_num_speakers']),
            max_rp_threshold=float(param_dict['max_rp_threshold']),
            max_num_speakers=int(param_dict['max_num_speakers']),
            enhanced_count_thres=int(param_dict['enhanced_count_thres']),
            sparse_search_volume=int(param_dict['sparse_search_volume']),
            fixed_thres=float(param_dict['fixed_thres']),
        )

    def forward_infer(self, embeddings_in_scales, timestamps_in_scales,
                      multiscale_segment_counts, multiscale_weights,
                      oracle_num_speakers=-1, max_rp_threshold=0.15, max_num_speakers=8,
                      enhanced_count_thres=80, sparse_search_volume=30, fixed_thres=-1.0,
                      chunk_cluster_count=None, embeddings_per_chunk=None):
        chunk_cluster_count = chunk_cluster_count or self.chunk_cluster_count
        embeddings_per_chunk = embeddings_per_chunk or self.embeddings_per_chunk
        if embeddings_per_chunk is not None and \
                int(np.max(np.asarray(multiscale_segment_counts))) > embeddings_per_chunk:
            return self.long_forward_infer(
                embeddings_in_scales, timestamps_in_scales, multiscale_segment_counts,
                multiscale_weights, oracle_num_speakers, max_rp_threshold, max_num_speakers,
                sparse_search_volume, fixed_thres, chunk_cluster_count, embeddings_per_chunk)
        return self.short_forward_infer(
            embeddings_in_scales, timestamps_in_scales, multiscale_segment_counts,
            multiscale_weights, oracle_num_speakers, max_rp_threshold, max_num_speakers,
            sparse_search_volume, fixed_thres)

    def short_forward_infer(self, embeddings_in_scales, timestamps_in_scales,
                            multiscale_segment_counts, multiscale_weights,
                            oracle_num_speakers, max_rp_threshold, max_num_speakers,
                            sparse_search_volume, fixed_thres):
        counts = [int(c) for c in np.asarray(multiscale_segment_counts)]
        embs, tss = split_input_data(embeddings_in_scales, timestamps_in_scales, counts)
        self.embeddings_in_scales, self.timestamps_in_scales = embs, tss
        N = counts[-1]
        if N <= 1:
            return jnp.zeros((N,), dtype=jnp.int32)
        # Fuse already padded to the affinity row extent -> no slice / re-pad copies.
        _, _, _, _, nrows = _affinity_tiles(N)
        emb_pad = get_scale_interpolated_embs(multiscale_weights, embs, tss,
                                              rows_out=nrows)                 # Pallas fuse
        mat = cos_affinity_matrix(emb_pad, n_valid=N, high_precision=True)    # Pallas
        Y = forward_unit_infer(mat, oracle_num_speakers, max_num_speakers,
                               max_rp_threshold, sparse_search_volume, fixed_thres)
        return jnp.asarray(Y, dtype=jnp.int32)

    def long_forward_infer(self, embeddings_in_scales, timestamps_in_scales,
                           multiscale_segment_counts, multiscale_weights,
                           oracle_num_speakers, max_rp_threshold, max_num_speakers,
                           sparse_search_volume, fixed_thres,
                           chunk_cluster_count, embeddings_per_chunk):
        self.check_input(embeddings_per_chunk, chunk_cluster_count, max_num_speakers)
        counts = [int(c) for c in np.asarray(multiscale_segment_counts)]
        embs, tss = split_input_data(embeddings_in_scales, timestamps_in_scales, counts)
        self.embeddings_in_scales, self.timestamps_in_scales = embs, tss

        org_len = counts[-1]
        D = int(np.asarray(embs[0]).shape[1])
        emb_pad = get_scale_interpolated_embs(multiscale_weights, embs, tss,
                                              rows_out=128)                    # Pallas fuse

        E = int(min(embeddings_per_chunk, org_len))
        total_window_count = self.get_div_ceil_count(org_len, E)
        win_offsets = [min(w * E, org_len - E) for w in range(total_window_count)]

        # Device-side window construction: one gather into the affinity-padded
        # layout -> no host round trip / H2D re-upload before the batched launch.
        _, _, _, _, nrows_w = _affinity_tiles(E)
        col = np.arange(nrows_w, dtype=np.int64)
        idx = np.asarray(win_offsets, dtype=np.int64)[:, None] + col[None, :]
        idx = np.where(col[None, :] < E, idx, np.int64(2 ** 30)).astype(np.int32)
        windows = jnp.take(emb_pad, jnp.asarray(idx), axis=0,
                           mode='fill', fill_value=0.0)        # (W, nrows_w, Dp)

        # One batched Pallas affinity + one vmapped spectral/k-means launch for
        # ALL windows; over-clustering path uses bf16 MXU inputs.
        mats = _affinity_impl(windows, n_valid=E, high_precision=False)        # Pallas
        overcluster_count = min(chunk_cluster_count, E)
        p = _nmesc_p(E, max_rp_threshold)
        Y_dev = _batched_spectral_kmeans(mats, k=overcluster_count, p=p)

        # Host copy of the fused embeddings (needed for the numpy merge bookkeeping);
        # transferred while the clustering launch above runs on device.
        emb_np = np.asarray(jax.device_get(emb_pad))[:org_len, :D]
        Y_parts = np.asarray(jax.device_get(Y_dev))

        window_offset = 0
        total_emb: List[np.ndarray] = []
        window_range_list: List[List[int]] = []
        absolute_merge_mapping: List[List[np.ndarray]] = []
        for win_index in range(total_window_count):
            offset_index = int(win_offsets[win_index])
            emb_part = emb_np[offset_index:offset_index + E]
            Y_part = np.asarray(Y_parts[win_index])
            num_to_be_merged = int(min(embeddings_per_chunk, emb_part.shape[0])
                                   - chunk_cluster_count)
            min_count = self.get_div_ceil_count(chunk_cluster_count, len(np.unique(Y_part)))
            uniq_labels, class_target_vol = get_merge_quantity(
                num_to_be_merged, Y_part, min_count)
            for label, merge_quantity in zip(uniq_labels, class_target_vol):
                merged_embs, index_mapping = run_reducer(
                    emb_part, int(label), int(merge_quantity), Y_part)
                total_emb.append(merged_embs)
                absolute_merge_mapping.append(
                    [index_mapping[0] + offset_index, index_mapping[1] + offset_index])
                window_range_list.append(
                    [window_offset, window_offset + merged_embs.shape[0]])
                window_offset += merged_embs.shape[0]

        reduced_embs = np.concatenate(total_emb, axis=0)
        # Final aggregated affinity in f32 (accuracy-sensitive path).
        reduced_mat = cos_affinity_matrix(jnp.asarray(reduced_embs),
                                          high_precision=True)                 # Pallas
        Y_aggr = np.asarray(jax.device_get(forward_unit_infer(
            reduced_mat, oracle_num_speakers=oracle_num_speakers,
            max_num_speakers=max_num_speakers, max_rp_threshold=max_rp_threshold,
            sparse_search_volume=sparse_search_volume, fixed_thres=fixed_thres)))
        if reduced_embs.shape[0] != Y_aggr.shape[0]:
            raise ValueError("embeddings / labels count mismatch after aggregation.")
        Y_unpack = self.unpack_labels(Y_aggr, window_range_list,
                                      absolute_merge_mapping, org_len)
        if Y_unpack.shape[0] != org_len:
            raise ValueError("unpacked labels / input embeddings count mismatch.")
        # PyTorch returns LongTensor (int64); JAX x64 is disabled by default -> int32.
        return jnp.asarray(Y_unpack, dtype=jnp.int32)


# ----------------------------------------------------------------------------
# Demo with small, deterministic synthetic inputs.
# ----------------------------------------------------------------------------
if __name__ == "__main__":
    key = jax.random.PRNGKey(0)
    D = 128                               # embedding dim (lane-aligned)
    counts = [16, 32, 48]                 # segments per scale (base/finest = last)
    wins = [3.0, 1.5, 1.0]                # segment length per scale (seconds)

    k_proto, k_noise = jax.random.split(key)
    protos = jax.random.normal(k_proto, (2, D), dtype=jnp.float32)  # two "speakers"
    nkeys = jax.random.split(k_noise, len(counts))

    emb_chunks, ts_chunks = [], []
    for s, (c, w) in enumerate(zip(counts, wins)):
        starts = jnp.arange(c, dtype=jnp.float32) * w
        ends = starts + w
        ts = jnp.stack([starts, ends], axis=1)
        centers = (starts + ends) / 2.0
        spk = (centers >= 24.0).astype(jnp.int32)                  # speaker change at 24s
        base = protos[spk]
        noise = 0.05 * jax.random.normal(nkeys[s], (c, D), dtype=jnp.float32)
        emb_chunks.append(base + noise)
        ts_chunks.append(ts)

    embeddings = jnp.concatenate(emb_chunks, axis=0)   # (96, 128) concatenated scales
    timestamps = jnp.concatenate(ts_chunks, axis=0)    # (96, 2)

    param_dict = {
        'embeddings': embeddings,
        'timestamps': timestamps,
        'multiscale_segment_counts': jnp.asarray(counts, dtype=jnp.int32),
        'multiscale_weights': jnp.asarray([1.2, 1.1, 1.0], dtype=jnp.float32),
        'oracle_num_speakers': jnp.asarray(2, dtype=jnp.int32),
        'max_num_speakers': jnp.asarray(4, dtype=jnp.int32),
        'enhanced_count_thres': jnp.asarray(80, dtype=jnp.int32),
        'sparse_search_volume': jnp.asarray(10, dtype=jnp.int32),
        'max_rp_threshold': jnp.asarray(0.15, dtype=jnp.float32),
        'fixed_thres': jnp.asarray(-1.0, dtype=jnp.float32),
    }

    model = LongFormSpeakerClustering(chunk_cluster_count=6, embeddings_per_chunk=16)
    labels = model.forward(param_dict)
    labels = jax.block_until_ready(labels)

    assert labels.shape == (48,), labels.shape
    assert labels.dtype == jnp.int32
    print("KERNEL_OK")
</pallas_src>

<mosaic_0001>
module attributes {stable_mosaic.version = 11 : i64} {
  func.func @_fuse_kernel(%arg0: i32, %arg1: memref<3xf32, #tpu.memory_space<smem>>, %arg2: memref<3x128x128xf32, #tpu.memory_space<vmem>>, %arg3: memref<128x128xf32, #tpu.memory_space<vmem>>) attributes {dimension_semantics = [#tpu.dimension_semantics<parallel>], iteration_bounds = array<i64: 1>, scalar_prefetch = 0 : i64, scratch_operands = 0 : i64, tpu.core_type = #tpu.core_type<tc>, window_params = [{transform_indices = @transform_0, window_bounds = array<i64: 3>}, {transform_indices = @transform_1, window_bounds = array<i64: 3, 128, 128>}, {transform_indices = @transform_2, window_bounds = array<i64: 128, 128>}]} {
    %c0 = arith.constant 0 : index
    %0 = memref.load %arg1[%c0] : memref<3xf32, #tpu.memory_space<smem>>
    %c0_0 = arith.constant 0 : index
    %c0_1 = arith.constant 0 : index
    %c0_2 = arith.constant 0 : index
    %1 = vector.load %arg2[%c0_0, %c0_1, %c0_2] : memref<3x128x128xf32, #tpu.memory_space<vmem>>, vector<1x128x128xf32>
    %2 = vector.shape_cast %1 : vector<1x128x128xf32> to vector<128x128xf32>
    %3 = vector.broadcast %0 : f32 to vector<128x128xf32>
    %4 = arith.mulf %3, %2 : vector<128x128xf32>
    %c1 = arith.constant 1 : index
    %5 = memref.load %arg1[%c1] : memref<3xf32, #tpu.memory_space<smem>>
    %c1_3 = arith.constant 1 : index
    %c0_4 = arith.constant 0 : index
    %c0_5 = arith.constant 0 : index
    %6 = vector.load %arg2[%c1_3, %c0_4, %c0_5] : memref<3x128x128xf32, #tpu.memory_space<vmem>>, vector<1x128x128xf32>
    %7 = vector.shape_cast %6 : vector<1x128x128xf32> to vector<128x128xf32>
    %8 = vector.broadcast %5 : f32 to vector<128x128xf32>
    %9 = arith.mulf %8, %7 : vector<128x128xf32>
    %10 = arith.addf %4, %9 : vector<128x128xf32>
    %c2 = arith.constant 2 : index
    %11 = memref.load %arg1[%c2] : memref<3xf32, #tpu.memory_space<smem>>
    %c2_6 = arith.constant 2 : index
    %c0_7 = arith.constant 0 : index
    %c0_8 = arith.constant 0 : index
    %12 = vector.load %arg2[%c2_6, %c0_7, %c0_8] : memref<3x128x128xf32, #tpu.memory_space<vmem>>, vector<1x128x128xf32>
    %13 = vector.shape_cast %12 : vector<1x128x128xf32> to vector<128x128xf32>
    %14 = vector.broadcast %11 : f32 to vector<128x128xf32>
    %15 = arith.mulf %14, %13 : vector<128x128xf32>
    %16 = arith.addf %10, %15 : vector<128x128xf32>
    %c0_9 = arith.constant 0 : index
    %c0_10 = arith.constant 0 : index
    %17 = vector.load %arg3[%c0_9, %c0_10] : memref<128x128xf32, #tpu.memory_space<vmem>>, vector<128x128xf32>
    tpu.vector_store %arg3[%c0_9, %c0_10], %16 {strides = array<i32>} : memref<128x128xf32, #tpu.memory_space<vmem>>, vector<128x128xf32>,
    return
  }
  func.func @transform_0(%arg0: i32) -> i32 {
    %c0_i32 = arith.constant 0 : i32
    %c0_i32_0 = arith.constant 0 : i32
    return %c0_i32 : i32
  }
  func.func @transform_1(%arg0: i32) -> (i32, i32, i32) {
    %c0_i32 = arith.constant 0 : i32
    %c0_i32_0 = arith.constant 0 : i32
    %c0_i32_1 = arith.constant 0 : i32
    return %c0_i32, %arg0, %c0_i32_0 : i32, i32, i32
  }
  func.func @transform_2(%arg0: i32) -> (i32, i32) {
    %c0_i32 = arith.constant 0 : i32
    %c0_i32_0 = arith.constant 0 : i32
    return %arg0, %c0_i32 : i32, i32
  }
}

</mosaic_0001>

<llo_original>
// kernel: _fuse_scales_call.1
$region0: #{_fuse_scales_call.1}
  #allocation0 [shape = 'u32[]', space=smem, size = 0x4, offset = 0x4, fixed_abs, tag = 'smem constant byte address 0x4 - core index']
  #allocation1 [shape = 'u32[144,128]{1,0:T(1,128)}', space=vmem, size = 0x12000, scoped, tag = 'internal scratch']
  %s0 = inlined_call_operand.vmem [shape: f32[3], index: 0, kind: input, shape index: {}]
  %s1 = inlined_call_operand.vmem [shape: f32[3,128,128], index: 1, kind: input, shape index: {}]
  %s2 = inlined_call_operand.hbm [shape: f32[128,128], index: 2, kind: output, shape index: {}]
  %s3 = sld [smem:[#allocation0]]
  $region22: #{_fuse_scales_call.1} parent=0
    _
  %s5 = ssub.s32 1, %s3
  %s6 = scalar_select 0, %s5, %s3
  $region1: #{_fuse_scales_call.1} parent=0
    #allocation2 [shape = 'u8[512]{0}', space=smem, size = 0x200, scoped, tag = 'input window, operand 0, single buffered']
    #allocation3 [shape = 's32[1]{0}', space=sflag, size = 0x4, scoped, tag = 'scoped memory for _fuse_scales_call.1']
    #allocation4 [shape = 's32[1]{0}', space=sflag, size = 0x4, scoped, tag = 'scoped memory for _fuse_scales_call.1']
    #allocation5 [shape = 'u8[65536]{0}', space=vmem, size = 0x10000, scoped, tag = 'output window, operand 0, single buffered']
    %7 = vsyncpa [#allocation4], 0
    %8 = vsyncpa [#allocation3], 0
    // Predicated region
    $region2: #{_fuse_scales_call.1} parent=1 // pred_check
      _
    $region3: #{_fuse_scales_call.1} parent=1 // pred_check_branch
      %10 = sbr.rel (0) target = $region5
    $region4: #{_fuse_scales_call.1} parent=1 // pred_region
      %s12 = ssub.s32 16, 16
      %13 = vsyncadd [#allocation4], %s12
      %s15 = sshll.u32 %s0, 4
      %s16 = int_to_ptr.vmem [resolvable:$true] %s15
      %18 = dma.vmem_to_smem %s16, 16, [#allocation2], [#allocation4]
    $region5: #{_fuse_scales_call.1} parent=1 // pred_fallthru
      _
    // Predicated region
    $region6: #{_fuse_scales_call.1} parent=1 // pred_check
      _
    $region7: #{_fuse_scales_call.1} parent=1 // pred_check_branch
      %20 = sbr.rel (0) target = $region9
    $region8: #{_fuse_scales_call.1} parent=1 // pred_region
      _
    $region9: #{_fuse_scales_call.1} parent=1 // pred_fallthru
      _
    // Predicated region
    $region10: #{_fuse_scales_call.1} parent=1 // pred_check
      _
    $region11: #{_fuse_scales_call.1} parent=1 // pred_check_branch
      %22 = sbr.rel (0) target = $region13
    $region12: #{_fuse_scales_call.1} parent=1 // pred_region
      %23 = dma.done [#allocation4], 16
    $region13: #{_fuse_scales_call.1} parent=1 // pred_fallthru
      _
    %24 = sfence
    %s25 = sld [smem:[#allocation2]]
    %v26 = vld [vmem:[%s1] sm:$0xff]
    %v27 = vld [vmem:[%s1 + $0x8] sm:$0xff]
    %v28 = vld [vmem:[%s1 + $0x10] sm:$0xff]
    %v29 = vld [vmem:[%s1 + $0x18] sm:$0xff]
    %v30 = vld [vmem:[%s1 + $0x20] sm:$0xff]
    %v31 = vld [vmem:[%s1 + $0x28] sm:$0xff]
    %v32 = vld [vmem:[%s1 + $0x30] sm:$0xff]
    %v33 = vld [vmem:[%s1 + $0x38] sm:$0xff]
    %v34 = vld [vmem:[%s1 + $0x40] sm:$0xff]
    %v35 = vld [vmem:[%s1 + $0x48] sm:$0xff]
    %v36 = vld [vmem:[%s1 + $0x50] sm:$0xff]
    %v37 = vld [vmem:[%s1 + $0x58] sm:$0xff]
    %v38 = vld [vmem:[%s1 + $0x60] sm:$0xff]
    %v39 = vld [vmem:[%s1 + $0x68] sm:$0xff]
    %v40 = vld [vmem:[%s1 + $0x70] sm:$0xff]
    %v41 = vld [vmem:[%s1 + $0x78] sm:$0xff]
    %v42 = vstv %s25
    %v43 = vmul.f32 %v42, %v26
    %v44 = vmul.f32 %v42, %v27
    %v45 = vmul.f32 %v42, %v28
    %v46 = vmul.f32 %v42, %v29
    %v47 = vmul.f32 %v42, %v30
    %v48 = vmul.f32 %v42, %v31
    %v49 = vmul.f32 %v42, %v32
    %v50 = vmul.f32 %v42, %v33
    %v51 = vmul.f32 %v42, %v34
    %v52 = vmul.f32 %v42, %v35
    %v53 = vmul.f32 %v42, %v36
    %v54 = vmul.f32 %v42, %v37
    %v55 = vmul.f32 %v42, %v38
    %v56 = vmul.f32 %v42, %v39
    %v57 = vmul.f32 %v42, %v40
    %v58 = vmul.f32 %v42, %v41
    %s59 = sld [smem:[#allocation2 + $0x1]]
    %s60 = scalar_lea.vmem %s1, 128
    %v61 = vld [vmem:[%s60] sm:$0xff]
    %v62 = vld [vmem:[%s60 + $0x8] sm:$0xff]
    %v63 = vld [vmem:[%s60 + $0x10] sm:$0xff]
    %v64 = vld [vmem:[%s60 + $0x18] sm:$0xff]
    %v65 = vld [vmem:[%s60 + $0x20] sm:$0xff]
    %v66 = vld [vmem:[%s60 + $0x28] sm:$0xff]
    %v67 = vld [vmem:[%s60 + $0x30] sm:$0xff]
    %v68 = vld [vmem:[%s60 + $0x38] sm:$0xff]
    %v69 = vld [vmem:[%s60 + $0x40] sm:$0xff]
    %v70 = vld [vmem:[%s60 + $0x48] sm:$0xff]
    %v71 = vld [vmem:[%s60 + $0x50] sm:$0xff]
    %v72 = vld [vmem:[%s60 + $0x58] sm:$0xff]
    %v73 = vld [vmem:[%s60 + $0x60] sm:$0xff]
    %v74 = vld [vmem:[%s60 + $0x68] sm:$0xff]
    %v75 = vld [vmem:[%s60 + $0x70] sm:$0xff]
    %v76 = vld [vmem:[%s60 + $0x78] sm:$0xff]
    %v77 = vstv %s59
    %v78 = vmul.f32 %v77, %v61
    %v79 = vmul.f32 %v77, %v62
    %v80 = vmul.f32 %v77, %v63
    %v81 = vmul.f32 %v77, %v64
    %v82 = vmul.f32 %v77, %v65
    %v83 = vmul.f32 %v77, %v66
    %v84 = vmul.f32 %v77, %v67
    %v85 = vmul.f32 %v77, %v68
    %v86 = vmul.f32 %v77, %v69
    %v87 = vmul.f32 %v77, %v70
    %v88 = vmul.f32 %v77, %v71
    %v89 = vmul.f32 %v77, %v72
    %v90 = vmul.f32 %v77, %v73
    %v91 = vmul.f32 %v77, %v74
    %v92 = vmul.f32 %v77, %v75
    %v93 = vmul.f32 %v77, %v76
    %v94 = vadd.f32 %v43, %v78
    %v95 = vadd.f32 %v44, %v79
    %v96 = vadd.f32 %v45, %v80
    %v97 = vadd.f32 %v46, %v81
    %v98 = vadd.f32 %v47, %v82
    %v99 = vadd.f32 %v48, %v83
    %v100 = vadd.f32 %v49, %v84
    %v101 = vadd.f32 %v50, %v85
    %v102 = vadd.f32 %v51, %v86
    %v103 = vadd.f32 %v52, %v87
    %v104 = vadd.f32 %v53, %v88
    %v105 = vadd.f32 %v54, %v89
    %v106 = vadd.f32 %v55, %v90
    %v107 = vadd.f32 %v56, %v91
    %v108 = vadd.f32 %v57, %v92
    %v109 = vadd.f32 %v58, %v93
    %s110 = sld [smem:[#allocation2 + $0x2]]
    %s111 = scalar_lea.vmem %s1, 256
    %v112 = vld [vmem:[%s111] sm:$0xff]
    %v113 = vld [vmem:[%s111 + $0x8] sm:$0xff]
    %v114 = vld [vmem:[%s111 + $0x10] sm:$0xff]
    %v115 = vld [vmem:[%s111 + $0x18] sm:$0xff]
    %v116 = vld [vmem:[%s111 + $0x20] sm:$0xff]
    %v117 = vld [vmem:[%s111 + $0x28] sm:$0xff]
    %v118 = vld [vmem:[%s111 + $0x30] sm:$0xff]
    %v119 = vld [vmem:[%s111 + $0x38] sm:$0xff]
    %v120 = vld [vmem:[%s111 + $0x40] sm:$0xff]
    %v121 = vld [vmem:[%s111 + $0x48] sm:$0xff]
    %v122 = vld [vmem:[%s111 + $0x50] sm:$0xff]
    %v123 = vld [vmem:[%s111 + $0x58] sm:$0xff]
    %v124 = vld [vmem:[%s111 + $0x60] sm:$0xff]
    %v125 = vld [vmem:[%s111 + $0x68] sm:$0xff]
    %v126 = vld [vmem:[%s111 + $0x70] sm:$0xff]
    %v127 = vld [vmem:[%s111 + $0x78] sm:$0xff]
    %v128 = vstv %s110
    %v129 = vmul.f32 %v128, %v112
    %v130 = vmul.f32 %v128, %v113
    %v131 = vmul.f32 %v128, %v114
    %v132 = vmul.f32 %v128, %v115
    %v133 = vmul.f32 %v128, %v116
    %v134 = vmul.f32 %v128, %v117
    %v135 = vmul.f32 %v128, %v118
    %v136 = vmul.f32 %v128, %v119
    %v137 = vmul.f32 %v128, %v120
    %v138 = vmul.f32 %v128, %v121
    %v139 = vmul.f32 %v128, %v122
    %v140 = vmul.f32 %v128, %v123
    %v141 = vmul.f32 %v128, %v124
    %v142 = vmul.f32 %v128, %v125
    %v143 = vmul.f32 %v128, %v126
    %v144 = vmul.f32 %v128, %v127
    %v145 = vadd.f32 %v94, %v129
    %v146 = vadd.f32 %v95, %v130
    %v147 = vadd.f32 %v96, %v131
    %v148 = vadd.f32 %v97, %v132
    %v149 = vadd.f32 %v98, %v133
    %v150 = vadd.f32 %v99, %v134
    %v151 = vadd.f32 %v100, %v135
    %v152 = vadd.f32 %v101, %v136
    %v153 = vadd.f32 %v102, %v137
    %v154 = vadd.f32 %v103, %v138
    %v155 = vadd.f32 %v104, %v139
    %v156 = vadd.f32 %v105, %v140
    %v157 = vadd.f32 %v106, %v141
    %v158 = vadd.f32 %v107, %v142
    %v159 = vadd.f32 %v108, %v143
    %v160 = vadd.f32 %v109, %v144
    %161 = vst [vmem:[#allocation5] sm:$0xff] %v145
    %162 = vst [vmem:[#allocation5 + $0x8] sm:$0xff] %v146
    %163 = vst [vmem:[#allocation5 + $0x10] sm:$0xff] %v147
    %164 = vst [vmem:[#allocation5 + $0x18] sm:$0xff] %v148
    %165 = vst [vmem:[#allocation5 + $0x20] sm:$0xff] %v149
    %166 = vst [vmem:[#allocation5 + $0x28] sm:$0xff] %v150
    %167 = vst [vmem:[#allocation5 + $0x30] sm:$0xff] %v151
    %168 = vst [vmem:[#allocation5 + $0x38] sm:$0xff] %v152
    %169 = vst [vmem:[#allocation5 + $0x40] sm:$0xff] %v153
    %170 = vst [vmem:[#allocation5 + $0x48] sm:$0xff] %v154
    %171 = vst [vmem:[#allocation5 + $0x50] sm:$0xff] %v155
    %172 = vst [vmem:[#allocation5 + $0x58] sm:$0xff] %v156
    %173 = vst [vmem:[#allocation5 + $0x60] sm:$0xff] %v157
    %174 = vst [vmem:[#allocation5 + $0x68] sm:$0xff] %v158
    %175 = vst [vmem:[#allocation5 + $0x70] sm:$0xff] %v159
    %176 = vst [vmem:[#allocation5 + $0x78] sm:$0xff] %v160
    // Predicated region
    $region14: #{_fuse_scales_call.1} parent=1 // pred_check
      _
    $region15: #{_fuse_scales_call.1} parent=1 // pred_check_branch
      %178 = sbr.rel (0) target = $region17
    $region16: #{_fuse_scales_call.1} parent=1 // pred_region
      %s180 = ssub.s32 2048, 2048
      %181 = vsyncadd [#allocation3], %s180
      %s182 = sshll.u32 [#allocation5], 4
      %s183 = int_to_ptr.vmem [resolvable:$true] %s182
      %188 = dma.vmem_to_hbm [thread:$0]  %s183, 2048, %s2, [#allocation3], 128, 128, 8
    $region17: #{_fuse_scales_call.1} parent=1 // pred_fallthru
      _
    // Predicated region
    $region18: #{_fuse_scales_call.1} parent=1 // pred_check
      _
    $region19: #{_fuse_scales_call.1} parent=1 // pred_check_branch
      %190 = sbr.rel (0) target = $region21
    $region20: #{_fuse_scales_call.1} parent=1 // pred_region
      %191 = dma.done [#allocation3], 2048
    $region21: #{_fuse_scales_call.1} parent=1 // pred_fallthru
      _
    %192 = vsyncpa [#allocation3], 1
    %193 = vsyncpa [#allocation4], 1

</llo_original>
